<compile_context>
chip_gen: v7x
topology: tpu7x:2x2x1
jax: 0.10.0
libtpu: 0.0.40
codegen_flags: <defaults>
</compile_context>

<pallas_src>
import functools

import numpy as np
import jax
import jax.numpy as jnp
from jax.experimental import pallas as pl
from jax.experimental.pallas import tpu as pltpu

_LANES = 128  # one full vreg lane row -> lane-dense one-hot store


def _make_greedy_kernel(S: int):
    """One grid step == one observation row; pure scalar-unit decision logic."""

    def kernel(obs_ref, out_ref):
        # obs_ref: flattened (num_rows * S,) f32 in SMEM (cheap scalar loads).
        # out_ref: (1, 1, _LANES) VMEM block for this grid row.
        i = pl.program_id(0)
        base = i * S

        flag = obs_ref[base + S - 2]          # obs[row, -2]
        a0 = obs_ref[base + 0]
        a1 = obs_ref[base + 1]
        a2 = obs_ref[base + 2]
        a3 = obs_ref[base + 3]
        a4 = obs_ref[base + 4]

        # argmin with ties -> first index (matches torch/np/jnp argmin).
        idx_neg1 = jnp.where(a2 < a1, 4, 3)              # argmin(obs[1:3]) + 3
        idx_pos1 = jnp.where(a4 < a3, 4, 3)              # argmin(obs[3:5]) + 3
        idx_else = jnp.where((a0 <= a1) & (a0 <= a2), 0,
                             jnp.where(a1 <= a2, 1, 2))  # argmin(obs[0:3])

        target = jnp.where(flag == -1.0, idx_neg1,
                           jnp.where(flag == 1.0, idx_pos1, idx_else))
        target = target.astype(jnp.int32)

        # Lane-dense one-hot: full 128-lane row, single store.
        lane = jax.lax.broadcasted_iota(jnp.int32, (1, 1, _LANES), 2)
        out_ref[...] = (lane == target).astype(out_ref.dtype)

    return kernel


def _greedy_rows_padded(obs_rows):
    """(N, S) f32 rows -> (N, 128) padded one-hot logits in a single launch."""
    N, S = obs_rows.shape
    obs_flat = obs_rows.reshape(-1)  # 1-D SMEM input: minimal padding / DMA

    out = pl.pallas_call(
        _make_greedy_kernel(S),
        out_shape=jax.ShapeDtypeStruct((N, 1, _LANES), jnp.float32),
        grid=(N,),
        in_specs=[pl.BlockSpec(memory_space=pltpu.MemorySpace.SMEM)],
        out_specs=pl.BlockSpec((1, 1, _LANES), lambda i: (i, 0, 0)),
        compiler_params=pltpu.CompilerParams(
            dimension_semantics=("parallel",)),
        cost_estimate=pl.CostEstimate(
            flops=20 * N,
            transcendentals=0,
            bytes_accessed=obs_flat.size * 4 + N * _LANES * 4),
    )(obs_flat)
    return out.reshape(N, _LANES)


@functools.partial(jax.jit, static_argnames=("action_dim",))
def _forward_jit(obs_row, action_dim):
    # Kernel call + slice live in the same jit, so the slice fuses with
    # whatever consumes the logits instead of being a standalone HLO.
    padded = _greedy_rows_padded(obs_row[None, :])   # (1, 128)
    return padded[0, :action_dim]


def greedy_policy_forward(obs, action_dim, state=None):
    """Exact equivalent of GreedyPolicyNet.forward (reads only obs[0])."""
    # The +-1 branches write logits[3]/logits[4]; torch would IndexError for
    # smaller action_dim, so we guard eagerly (documented deviation).
    assert action_dim >= 5, "GreedyPolicyNet.forward requires action_dim >= 5"
    assert action_dim <= _LANES
    obs = jnp.asarray(obs, dtype=jnp.float32)        # explicit f32 for SMEM
    assert obs.ndim == 2 and obs.shape[1] >= 5, "forward reads obs[0, 0:5] / obs[0, -2]"
    return _forward_jit(obs[0], action_dim=action_dim), state


@functools.partial(jax.jit, static_argnames=("action_dim",))
def greedy_policy_batched(obs_batch, action_dim):
    """Amortized variant: each row is treated as its own obs[0]; one launch."""
    obs_batch = jnp.asarray(obs_batch, dtype=jnp.float32)
    return _greedy_rows_padded(obs_batch)[:, :action_dim]


def _torch_reference(obs_np, action_dim):
    """NumPy re-implementation of the torch forward (verification only)."""
    logits = np.zeros(action_dim, dtype=np.float32)
    if obs_np[0, -2] == -1:
        logits[int(np.argmin(obs_np[0, 1:3])) + 3] = 1
    elif obs_np[0, -2] == 1:
        logits[int(np.argmin(obs_np[0, 3:5])) + 3] = 1
    else:
        logits[int(np.argmin(obs_np[0, 0:3]))] = 1
    return logits


if __name__ == "__main__":
    # Shapes consistent with the module: state_shape=8 -> input_dim=8,
    # action_shape=6 -> action_dim=6 (forward indexes logits up to index 4).
    B, S, A = 2, 8, 6

    key = jax.random.PRNGKey(0)
    base_obs = jax.random.uniform(key, (B, S), dtype=jnp.float32)

    ok = True

    # 1) Single-observation forward: exercise all three branches.
    for flag_val in (-1.0, 1.0, 0.0):
        obs = base_obs.at[0, S - 2].set(flag_val)
        logits, state = greedy_policy_forward(obs, A, state=None)
        logits = jax.block_until_ready(logits)
        ref = _torch_reference(np.asarray(obs), A)
        if logits.shape != (A,) or not np.allclose(np.asarray(logits), ref):
            ok = False

    # 2) Batched (amortized-launch) path: 4 rows covering all branches + a tie.
    rows = jax.random.uniform(jax.random.PRNGKey(0), (4, S), dtype=jnp.float32)
    rows = rows.at[0, S - 2].set(-1.0)
    rows = rows.at[1, S - 2].set(1.0)
    rows = rows.at[2, S - 2].set(0.0)
    rows = rows.at[3, S - 2].set(0.0)
    rows = rows.at[3, 0].set(rows[3, 1])   # tie on the else branch
    batched = jax.block_until_ready(greedy_policy_batched(rows, action_dim=A))
    for r in range(rows.shape[0]):
        ref = _torch_reference(np.asarray(rows[r:r + 1]), A)
        if not np.allclose(np.asarray(batched[r]), ref):
            ok = False

    print("KERNEL_OK" if ok else "MISMATCH")
</pallas_src>

<mosaic_0001>
module attributes {stable_mosaic.version = 11 : i64} {
  func.func @kernel(%arg0: i32, %arg1: memref<8xf32, #tpu.memory_space<smem>>, %arg2: memref<1x1x128xf32, #tpu.memory_space<vmem>>) attributes {dimension_semantics = [#tpu.dimension_semantics<parallel>], iteration_bounds = array<i64: 1>, scalar_prefetch = 0 : i64, scratch_operands = 0 : i64, tpu.core_type = #tpu.core_type<tc>, window_params = [{transform_indices = @transform_0, window_bounds = array<i64: 8>}, {transform_indices = @transform_1, window_bounds = array<i64: 1, 1, 128>}]} {
    %c8_i32 = arith.constant 8 : i32
    %0 = arith.muli %arg0, %c8_i32 : i32
    %c8_i32_0 = arith.constant 8 : i32
    %1 = arith.addi %0, %c8_i32_0 : i32
    %c2_i32 = arith.constant 2 : i32
    %2 = arith.subi %1, %c2_i32 : i32
    %3 = arith.index_cast %2 : i32 to index
    %4 = memref.load %arg1[%3] : memref<8xf32, #tpu.memory_space<smem>>
    %c0_i32 = arith.constant 0 : i32
    %5 = arith.addi %0, %c0_i32 : i32
    %6 = arith.index_cast %5 : i32 to index
    %7 = memref.load %arg1[%6] : memref<8xf32, #tpu.memory_space<smem>>
    %c1_i32 = arith.constant 1 : i32
    %8 = arith.addi %0, %c1_i32 : i32
    %9 = arith.index_cast %8 : i32 to index
    %10 = memref.load %arg1[%9] : memref<8xf32, #tpu.memory_space<smem>>
    %c2_i32_1 = arith.constant 2 : i32
    %11 = arith.addi %0, %c2_i32_1 : i32
    %12 = arith.index_cast %11 : i32 to index
    %13 = memref.load %arg1[%12] : memref<8xf32, #tpu.memory_space<smem>>
    %c3_i32 = arith.constant 3 : i32
    %14 = arith.addi %0, %c3_i32 : i32
    %15 = arith.index_cast %14 : i32 to index
    %16 = memref.load %arg1[%15] : memref<8xf32, #tpu.memory_space<smem>>
    %c4_i32 = arith.constant 4 : i32
    %17 = arith.addi %0, %c4_i32 : i32
    %18 = arith.index_cast %17 : i32 to index
    %19 = memref.load %arg1[%18] : memref<8xf32, #tpu.memory_space<smem>>
    %20 = arith.cmpf olt, %13, %10 : f32
    %c4_i32_2 = arith.constant 4 : i32
    %c3_i32_3 = arith.constant 3 : i32
    %21 = arith.select %20, %c4_i32_2, %c3_i32_3 : i32
    %22 = arith.cmpf olt, %19, %16 : f32
    %c4_i32_4 = arith.constant 4 : i32
    %c3_i32_5 = arith.constant 3 : i32
    %23 = arith.select %22, %c4_i32_4, %c3_i32_5 : i32
    %24 = arith.cmpf ole, %7, %10 : f32
    %25 = arith.cmpf ole, %7, %13 : f32
    %26 = arith.andi %24, %25 : i1
    %27 = arith.cmpf ole, %10, %13 : f32
    %c1_i32_6 = arith.constant 1 : i32
    %c2_i32_7 = arith.constant 2 : i32
    %28 = arith.select %27, %c1_i32_6, %c2_i32_7 : i32
    %c0_i32_8 = arith.constant 0 : i32
    %29 = arith.select %26, %c0_i32_8, %28 : i32
    %cst = arith.constant -1.000000e+00 : f32
    %30 = arith.cmpf oeq, %4, %cst : f32
    %cst_9 = arith.constant 1.000000e+00 : f32
    %31 = arith.cmpf oeq, %4, %cst_9 : f32
    %32 = arith.select %31, %23, %29 : i32
    %33 = arith.select %30, %21, %32 : i32
    %34 = tpu.iota {dimensions = array<i32: 2>} : vector<1x1x128xi32>
    %35 = vector.broadcast %33 : i32 to vector<1x1x128xi32>
    %36 = arith.cmpi eq, %34, %35 : vector<1x1x128xi32>
    %37 = arith.extui %36 : vector<1x1x128xi1> to vector<1x1x128xi32>
    %38 = arith.sitofp %37 : vector<1x1x128xi32> to vector<1x1x128xf32>
    %c0 = arith.constant 0 : index
    %c0_10 = arith.constant 0 : index
    %c0_11 = arith.constant 0 : index
    %39 = vector.load %arg2[%c0, %c0_10, %c0_11] : memref<1x1x128xf32, #tpu.memory_space<vmem>>, vector<1x1x128xf32>
    tpu.vector_store %arg2[%c0, %c0_10, %c0_11], %38 {strides = array<i32>} : memref<1x1x128xf32, #tpu.memory_space<vmem>>, vector<1x1x128xf32>,
    return
  }
  func.func @transform_0(%arg0: i32) -> i32 {
    %c0_i32 = arith.constant 0 : i32
    %c0_i32_0 = arith.constant 0 : i32
    return %c0_i32 : i32
  }
  func.func @transform_1(%arg0: i32) -> (i32, i32, i32) {
    %c0_i32 = arith.constant 0 : i32
    %c0_i32_0 = arith.constant 0 : i32
    %c0_i32_1 = arith.constant 0 : i32
    return %arg0, %c0_i32, %c0_i32_0 : i32, i32, i32
  }
}

</mosaic_0001>

<llo_original>
// kernel: _forward_jit.1
$region0: #{_forward_jit.1}
  #allocation0 [shape = 'u32[]', space=smem, size = 0x4, offset = 0x4, fixed_abs, tag = 'smem constant byte address 0x4 - core index']
  #allocation1 [shape = 'u32[144,128]{1,0:T(1,128)}', space=vmem, size = 0x12000, scoped, tag = 'internal scratch']
  %s0 = inlined_call_operand.hbm [shape: f32[8], index: 0, kind: input, shape index: {}]
  %s1 = inlined_call_operand.vmem [shape: f32[1,1,128], index: 1, kind: output, shape index: {}]
  %s2 = sld [smem:[#allocation0]]
  $region18: #{_forward_jit.1} parent=0
    _
  %s4 = ssub.s32 1, %s2
  %s5 = scalar_select 0, %s4, %s2
  $region1: #{_forward_jit.1} parent=0
    #allocation2 [shape = 'u8[512]{0}', space=smem, size = 0x200, scoped, tag = 'input window, operand 0, single buffered']
    #allocation3 [shape = 's32[1]{0}', space=sflag, size = 0x4, scoped, tag = 'scoped memory for _forward_jit.1']
    %6 = vsyncpa [#allocation3], 0
    // Predicated region
    $region2: #{_forward_jit.1} parent=1 // pred_check
      _
    $region3: #{_forward_jit.1} parent=1 // pred_check_branch
      %8 = sbr.rel (0) target = $region5
    $region4: #{_forward_jit.1} parent=1 // pred_region
      %s10 = ssub.s32 16, 16
      %11 = vsyncadd [#allocation3], %s10
      %14 = dma.hbm_to_smem %s0, 16, [#allocation2], [#allocation3]
    $region5: #{_forward_jit.1} parent=1 // pred_fallthru
      _
    // Predicated region
    $region6: #{_forward_jit.1} parent=1 // pred_check
      _
    $region7: #{_forward_jit.1} parent=1 // pred_check_branch
      %16 = sbr.rel (0) target = $region9
    $region8: #{_forward_jit.1} parent=1 // pred_region
      %17 = dma.done [#allocation3], 16
    $region9: #{_forward_jit.1} parent=1 // pred_fallthru
      _
    %18 = sfence
    %s19 = smul.u32 0, 8
    %s20 = sadd.s32 %s19, 6
    %s21 = sld [smem:[#allocation2 + %s20]]
    %s22 = sld [smem:[#allocation2 + %s19]]
    %s23 = sadd.s32 %s19, 1
    %s24 = sld [smem:[#allocation2 + %s23]]
    %s25 = sadd.s32 %s19, 2
    %s26 = sld [smem:[#allocation2 + %s25]]
    %s27 = sadd.s32 %s19, 3
    %s28 = sld [smem:[#allocation2 + %s27]]
    %s29 = sadd.s32 %s19, 4
    %s30 = sld [smem:[#allocation2 + %s29]]
    %p31 = scmp.lt.f32.partialorder %s26, %s24
    %s32 = scalar_select %p31, 4, 3
    %p33 = scmp.lt.f32.partialorder %s30, %s28
    %s34 = scalar_select %p33, 4, 3
    %p35 = scmp.le.f32.partialorder %s22, %s24
    %p36 = scmp.le.f32.partialorder %s22, %s26
    %p37 = pnand %p35, %p36
    %p38 = pneg %p37
    %p39 = scmp.le.f32.partialorder %s24, %s26
    %s40 = scalar_select %p39, 1, 2
    %s41 = scalar_select %p38, 0, %s40
    %p42 = scmp.eq.f32.partialorder %s21, -1.0
    %p43 = scmp.eq.f32.partialorder %s21, 1.0
    %s44 = scalar_select %p43, %s34, %s41
    %s45 = scalar_select %p42, %s32, %s44
    %v46 = vlaneseq
    %v47 = vand.u32 %v46, 127
    %v48 = vstv %s45
    %vm49 = vcmp.eq.s32.totalorder %v47, %v48
    %v50 = vsel %vm49, 1, 0
    %v51 = vcvt.s32.f32 %v50
    %52 = vst [vmem:[%s1] sm:$0x1] %v51
    // Predicated region
    $region10: #{_forward_jit.1} parent=1 // pred_check
      _
    $region11: #{_forward_jit.1} parent=1 // pred_check_branch
      %54 = sbr.rel (0) target = $region13
    $region12: #{_forward_jit.1} parent=1 // pred_region
      _
    $region13: #{_forward_jit.1} parent=1 // pred_fallthru
      _
    // Predicated region
    $region14: #{_forward_jit.1} parent=1 // pred_check
      _
    $region15: #{_forward_jit.1} parent=1 // pred_check_branch
      %56 = sbr.rel (0) target = $region17
    $region16: #{_forward_jit.1} parent=1 // pred_region
      _
    $region17: #{_forward_jit.1} parent=1 // pred_fallthru
      _
    %57 = vsyncpa [#allocation3], 1

</llo_original>
